<compile_context>
chip_gen: v7x
topology: tpu7x:2x2x1
jax: 0.10.0
libtpu: 0.0.40
codegen_flags: <defaults>
</compile_context>

<pallas_src>
import jax
import jax.numpy as jnp
from jax.experimental import pallas as pl
from jax.experimental.pallas import tpu as pltpu


def encoder_kernel(x_ref, y_ref, avg_ref,
                   w1x_ref, w1y_ref, b1_ref,
                   w2_ref, b2_ref, w3_ref, b3_ref,
                   r_ref):
    """One grid step: BB batch elements, pre-flattened to (BB*N, feature).

    x_ref: (BB*N, Dx), y_ref: (BB*N, Dy)   [stream dtype: f32 or bf16]
    avg_ref: (BB, BB*N) block-diagonal averaging matrix (1/N entries), f32
    r_ref: (BB, R) f32
    """
    x = x_ref[...].astype(jnp.float32)
    y = y_ref[...].astype(jnp.float32)

    # Layer 1: split-W1 form of concat([x, y], -1) @ W1 + b1 (no lane concat).
    h = (jnp.dot(x, w1x_ref[...], preferred_element_type=jnp.float32)
         + jnp.dot(y, w1y_ref[...], preferred_element_type=jnp.float32)
         + b1_ref[...])
    h = jnp.maximum(h, 0.0)

    # Layer 2.
    h = jnp.dot(h, w2_ref[...], preferred_element_type=jnp.float32) + b2_ref[...]
    h = jnp.maximum(h, 0.0)

    # Layer 3.
    h = jnp.dot(h, w3_ref[...], preferred_element_type=jnp.float32) + b3_ref[...]
    h = jnp.maximum(h, 0.0)

    # Mean over N on the MXU: r[b] = sum_n h[b*N + n] / N (block-diagonal avg),
    # avoiding a sublane-splitting reshape + XLU reduction every step.
    r_ref[...] = jnp.dot(avg_ref[...], h, preferred_element_type=jnp.float32)


def _round_up(x, m):
    return ((x + m - 1) // m) * m


def _vmem_budget():
    """(block budget, vmem_limit_bytes, capacity), gated on the TPU generation.

    v5e/v6e: 128 MiB VMEM per TensorCore -> raise the scoped limit and spend
    more on blocks.  v7x: only 64 MiB -> stay under ~40-48 MiB.
    """
    try:
        cap = int(getattr(pltpu.get_tpu_info(), "vmem_capacity_bytes", 64 << 20))
    except Exception:               # not queryable -> be conservative (v7x size)
        cap = 64 << 20
    if cap >= (100 << 20):          # v5e / v6e (128 MiB physical)
        return 64 << 20, 96 << 20, cap
    return 40 << 20, 48 << 20, cap  # v7x (64 MiB physical)


def _choose_tiling(B, N, Dx, Dy, H, R, in_itemsize):
    """Pick (BB, num_blocks, B_pad, vmem_limit).

    Padding-aware: VMEM tiles are (8,128)-padded (16 sublanes for bf16), so a
    (rows, 4) block really occupies rows*128 words.  BB is the largest
    aligned batch block whose double-buffered inputs + activations + resident
    weights + averaging matrix fit the per-generation budget, aiming for
    ~2048 fused rows per grid step, with >=2 blocks so both v7x TensorCores
    get work whenever B > 1.
    """
    block_budget, vmem_limit, cap = _vmem_budget()
    align = 8 if in_itemsize >= 4 else (16 if in_itemsize == 2 else 32)
    lane = lambda d: _round_up(max(int(d), 1), 128)

    # Resident (constant-index) parameters, double-buffered, tile-padded.
    w_bytes = 2 * 4 * (_round_up(Dx, 8) * lane(H) + _round_up(Dy, 8) * lane(H)
                       + _round_up(H, 8) * lane(H) + _round_up(H, 8) * lane(R)
                       + 2 * 8 * lane(H) + 8 * lane(R))

    def vmem_needed(bb):
        rows = bb * N
        x_bytes = 2 * rows * lane(Dx) * in_itemsize           # double-buffered
        y_bytes = 2 * rows * lane(Dy) * in_itemsize
        act_bytes = rows * (lane(Dx) + lane(Dy) + 2 * lane(H) + lane(R)) * 4
        avg_bytes = 2 * bb * _round_up(rows, 128) * 4
        out_bytes = 2 * _round_up(bb, 8) * lane(R) * 4
        return x_bytes + y_bytes + act_bytes + avg_bytes + out_bytes + w_bytes

    target_rows = 2048                       # 512+ rows ~ 85% of HBM roofline
    bb = max(align, (max(1, target_rows // N) // align) * align)
    bb = min(bb, _round_up(B, align))        # never pad batch past one block
    while bb > align and vmem_needed(bb) > block_budget:
        bb -= align

    need = vmem_needed(bb)
    if need > block_budget:
        # Smallest legal block still over the target budget (very large N):
        # raise the compiler limit toward physical capacity.
        # TODO(synk): for very large N, tile N on an inner "arbitrary" grid
        # axis with a sum accumulator instead of one monolithic block.
        vmem_limit = max(vmem_limit, min(need + (8 << 20), cap - (8 << 20)))

    # Give both v7x TensorCores work: at least 2 grid blocks whenever B > 1.
    if B > 1:
        bb = min(bb, max(align, _round_up(pl.cdiv(B, 2), align)))
    num_blocks = max(2 if B > 1 else 1, pl.cdiv(B, bb))
    return bb, num_blocks, num_blocks * bb, vmem_limit


def encoder_forward(x, y, params, *, stream_dtype=None, input_buffers=2):
    """x: (B, N, Dx), y: (B, N, Dy) -> r: (B, r_dim) float32.

    stream_dtype: dtype used to stream x/y through HBM (jnp.bfloat16 halves the
      dominant byte stream on v6e/v7x; accumulation stays f32).
    input_buffers: pipeline depth for the x/y streams (3 can help v5e).
    """
    w1, b1, w2, b2, w3, b3 = params
    B, N, Dx = x.shape
    Dy = y.shape[2]
    H = w1.shape[1]
    R = w3.shape[1]
    if stream_dtype is None:
        stream_dtype = x.dtype
    stream_dtype = jnp.dtype(stream_dtype)

    # Split W1 so the kernel never concatenates x and y on the lane axis.
    w1x = w1[:Dx]
    w1y = w1[Dx:]

    BB, num_blocks, B_pad, vmem_limit = _choose_tiling(
        B, N, Dx, Dy, H, R, stream_dtype.itemsize)

    if B_pad != B:
        # Zero-pad the batch axis; padded rows only produce padded output rows
        # (the averaging matrix is block-diagonal), which are sliced off below.
        pad = B_pad - B
        x = jnp.pad(x, ((0, pad), (0, 0), (0, 0)))
        y = jnp.pad(y, ((0, pad), (0, 0), (0, 0)))

    # Pre-flatten in the wrapper (free metadata reshape) so the kernel never
    # merges the sublane axis, and cast the streamed operands.
    x2 = x.reshape(B_pad * N, Dx).astype(stream_dtype)
    y2 = y.reshape(B_pad * N, Dy).astype(stream_dtype)

    # Block-diagonal averaging matrix (DMA'd once, resident in VMEM): row b
    # has 1/N in columns [b*N, (b+1)*N), so avg @ h == mean over the N axis.
    avg = jnp.kron(jnp.eye(BB, dtype=jnp.float32),
                   jnp.full((1, N), 1.0 / N, dtype=jnp.float32))

    rows_blk = BB * N
    flops = (2 * B_pad * N * ((Dx + Dy) * H + H * H + H * R)
             + 2 * num_blocks * BB * rows_blk * R)
    bytes_accessed = (B_pad * N * (Dx + Dy) * stream_dtype.itemsize
                      + 4 * ((Dx + Dy) * H + H * H + H * R + 2 * H + R)
                      + 4 * BB * rows_blk
                      + 4 * B_pad * R)
    cost = pl.CostEstimate(flops=flops, transcendentals=0,
                           bytes_accessed=bytes_accessed)

    stream_kwargs = {} if input_buffers == 2 else dict(
        pipeline_mode=pl.Buffered(input_buffers))

    r = pl.pallas_call(
        encoder_kernel,
        out_shape=jax.ShapeDtypeStruct((B_pad, R), jnp.float32),
        grid_spec=pltpu.PrefetchScalarGridSpec(
            num_scalar_prefetch=0,
            grid=(num_blocks,),
            in_specs=[
                pl.BlockSpec((rows_blk, Dx), lambda b: (b, 0), **stream_kwargs),
                pl.BlockSpec((rows_blk, Dy), lambda b: (b, 0), **stream_kwargs),
                # Constant block index -> resident in VMEM across grid steps.
                pl.BlockSpec((BB, rows_blk), lambda b: (0, 0)),
                pl.BlockSpec((Dx, H), lambda b: (0, 0)),
                pl.BlockSpec((Dy, H), lambda b: (0, 0)),
                pl.BlockSpec((1, H), lambda b: (0, 0)),
                pl.BlockSpec((H, H), lambda b: (0, 0)),
                pl.BlockSpec((1, H), lambda b: (0, 0)),
                pl.BlockSpec((H, R), lambda b: (0, 0)),
                pl.BlockSpec((1, R), lambda b: (0, 0)),
            ],
            out_specs=pl.BlockSpec((BB, R), lambda b: (b, 0)),
        ),
        compiler_params=pltpu.CompilerParams(
            dimension_semantics=("parallel",),
            vmem_limit_bytes=vmem_limit,
        ),
        cost_estimate=cost,
    )(x2, y2, avg, w1x, w1y, b1, w2, b2, w3, b3)

    return r[:B]


def init_params(key, d_in, hidden, r_dim):
    """Deterministic init mimicking nn.Linear's uniform(-1/sqrt(fan_in), ...)."""
    def linear(key, fan_in, fan_out):
        k1, k2 = jax.random.split(key)
        bound = 1.0 / jnp.sqrt(fan_in)
        w = jax.random.uniform(k1, (fan_in, fan_out), jnp.float32, -bound, bound)
        b = jax.random.uniform(k2, (1, fan_out), jnp.float32, -bound, bound)
        return w, b

    k1, k2, k3 = jax.random.split(key, 3)
    w1, b1 = linear(k1, d_in, hidden)
    w2, b2 = linear(k2, hidden, hidden)
    w3, b3 = linear(k3, hidden, r_dim)
    return (w1, b1, w2, b2, w3, b3)


def encoder_reference(x, y, params):
    """Pure-JAX reference matching the PyTorch forward semantics."""
    w1, b1, w2, b2, w3, b3 = params
    xy = jnp.concatenate([x, y], axis=2)
    h = jax.nn.relu(xy @ w1 + b1)
    h = jax.nn.relu(h @ w2 + b2)
    h = jax.nn.relu(h @ w3 + b3)
    return jnp.mean(h, axis=1)


if __name__ == "__main__":
    B, N, Dx, Dy = 2, 8, 4, 4          # small shapes consistent with the module
    HIDDEN, R_DIM = 32, 16

    key = jax.random.PRNGKey(0)
    kx, ky, kp = jax.random.split(key, 3)
    x = jax.random.normal(kx, (B, N, Dx), jnp.float32)
    y = jax.random.normal(ky, (B, N, Dy), jnp.float32)
    params = init_params(kp, Dx + Dy, HIDDEN, R_DIM)

    r_ref = encoder_reference(x, y, params)

    # f32 streaming: matches the reference tightly.
    r = jax.block_until_ready(encoder_forward(x, y, params))
    assert r.shape == (B, R_DIM)
    assert jnp.allclose(r, r_ref, atol=1e-5, rtol=1e-5)

    # bf16 input streaming (v6e/v7x HBM-bandwidth saver): inputs are rounded to
    # bf16 before the kernel, so compare with a loosened tolerance.
    r_bf16 = jax.block_until_ready(
        encoder_forward(x, y, params, stream_dtype=jnp.bfloat16))
    assert r_bf16.shape == (B, R_DIM)
    assert jnp.allclose(r_bf16, r_ref, atol=3e-2, rtol=3e-2)

    print("KERNEL_OK")
</pallas_src>

<mosaic_0001>
module attributes {stable_mosaic.version = 11 : i64} {
  func.func @encoder_kernel(%arg0: i32, %arg1: memref<64x4xf32, #tpu.memory_space<vmem>>, %arg2: memref<64x4xf32, #tpu.memory_space<vmem>>, %arg3: memref<8x64xf32, #tpu.memory_space<vmem>>, %arg4: memref<4x32xf32, #tpu.memory_space<vmem>>, %arg5: memref<4x32xf32, #tpu.memory_space<vmem>>, %arg6: memref<1x32xf32, #tpu.memory_space<vmem>>, %arg7: memref<32x32xf32, #tpu.memory_space<vmem>>, %arg8: memref<1x32xf32, #tpu.memory_space<vmem>>, %arg9: memref<32x16xf32, #tpu.memory_space<vmem>>, %arg10: memref<1x16xf32, #tpu.memory_space<vmem>>, %arg11: memref<8x16xf32, #tpu.memory_space<vmem>>) attributes {dimension_semantics = [#tpu.dimension_semantics<parallel>], iteration_bounds = array<i64: 2>, scalar_prefetch = 0 : i64, scratch_operands = 0 : i64, tpu.core_type = #tpu.core_type<tc>, window_params = [{transform_indices = @transform_0, window_bounds = array<i64: 64, 4>}, {transform_indices = @transform_1, window_bounds = array<i64: 64, 4>}, {pipeline_mode = #tpu.pipeline_mode<synchronous>, transform_indices = @transform_2, window_bounds = array<i64: 8, 64>}, {pipeline_mode = #tpu.pipeline_mode<synchronous>, transform_indices = @transform_3, window_bounds = array<i64: 4, 32>}, {pipeline_mode = #tpu.pipeline_mode<synchronous>, transform_indices = @transform_4, window_bounds = array<i64: 4, 32>}, {pipeline_mode = #tpu.pipeline_mode<synchronous>, transform_indices = @transform_5, window_bounds = array<i64: 1, 32>}, {pipeline_mode = #tpu.pipeline_mode<synchronous>, transform_indices = @transform_6, window_bounds = array<i64: 32, 32>}, {pipeline_mode = #tpu.pipeline_mode<synchronous>, transform_indices = @transform_7, window_bounds = array<i64: 1, 32>}, {pipeline_mode = #tpu.pipeline_mode<synchronous>, transform_indices = @transform_8, window_bounds = array<i64: 32, 16>}, {pipeline_mode = #tpu.pipeline_mode<synchronous>, transform_indices = @transform_9, window_bounds = array<i64: 1, 16>}, {transform_indices = @transform_10, window_bounds = array<i64: 8, 16>}]} {
    %c0 = arith.constant 0 : index
    %c0_0 = arith.constant 0 : index
    %0 = vector.load %arg1[%c0, %c0_0] : memref<64x4xf32, #tpu.memory_space<vmem>>, vector<64x4xf32>
    %c0_1 = arith.constant 0 : index
    %c0_2 = arith.constant 0 : index
    %1 = vector.load %arg2[%c0_1, %c0_2] : memref<64x4xf32, #tpu.memory_space<vmem>>, vector<64x4xf32>
    %c0_3 = arith.constant 0 : index
    %c0_4 = arith.constant 0 : index
    %2 = vector.load %arg4[%c0_3, %c0_4] : memref<4x32xf32, #tpu.memory_space<vmem>>, vector<4x32xf32>
    %cst = arith.constant dense<0.000000e+00> : vector<64x32xf32>
    %3 = tpu.matmul %0, %2, %cst {dimension_numbers = #tpu.dot_dimension_numbers<[1], [0], [0], [1], [0, 0, 1, 1], [], []>} : vector<64x4xf32>, vector<4x32xf32>, vector<64x32xf32> -> vector<64x32xf32>
    %c0_5 = arith.constant 0 : index
    %c0_6 = arith.constant 0 : index
    %4 = vector.load %arg5[%c0_5, %c0_6] : memref<4x32xf32, #tpu.memory_space<vmem>>, vector<4x32xf32>
    %cst_7 = arith.constant dense<0.000000e+00> : vector<64x32xf32>
    %5 = tpu.matmul %1, %4, %cst_7 {dimension_numbers = #tpu.dot_dimension_numbers<[1], [0], [0], [1], [0, 0, 1, 1], [], []>} : vector<64x4xf32>, vector<4x32xf32>, vector<64x32xf32> -> vector<64x32xf32>
    %6 = arith.addf %3, %5 : vector<64x32xf32>
    %c0_8 = arith.constant 0 : index
    %c0_9 = arith.constant 0 : index
    %7 = vector.load %arg6[%c0_8, %c0_9] : memref<1x32xf32, #tpu.memory_space<vmem>>, vector<1x32xf32>
    %8 = vector.broadcast %7 : vector<1x32xf32> to vector<64x32xf32>
    %9 = arith.addf %6, %8 : vector<64x32xf32>
    %cst_10 = arith.constant 0.000000e+00 : f32
    %10 = vector.broadcast %cst_10 : f32 to vector<64x32xf32>
    %11 = arith.maximumf %9, %10 : vector<64x32xf32>
    %c0_11 = arith.constant 0 : index
    %c0_12 = arith.constant 0 : index
    %12 = vector.load %arg7[%c0_11, %c0_12] : memref<32x32xf32, #tpu.memory_space<vmem>>, vector<32x32xf32>
    %cst_13 = arith.constant dense<0.000000e+00> : vector<64x32xf32>
    %13 = tpu.matmul %11, %12, %cst_13 {dimension_numbers = #tpu.dot_dimension_numbers<[1], [0], [0], [1], [0, 0, 1, 1], [], []>} : vector<64x32xf32>, vector<32x32xf32>, vector<64x32xf32> -> vector<64x32xf32>
    %c0_14 = arith.constant 0 : index
    %c0_15 = arith.constant 0 : index
    %14 = vector.load %arg8[%c0_14, %c0_15] : memref<1x32xf32, #tpu.memory_space<vmem>>, vector<1x32xf32>
    %15 = vector.broadcast %14 : vector<1x32xf32> to vector<64x32xf32>
    %16 = arith.addf %13, %15 : vector<64x32xf32>
    %cst_16 = arith.constant 0.000000e+00 : f32
    %17 = vector.broadcast %cst_16 : f32 to vector<64x32xf32>
    %18 = arith.maximumf %16, %17 : vector<64x32xf32>
    %c0_17 = arith.constant 0 : index
    %c0_18 = arith.constant 0 : index
    %19 = vector.load %arg9[%c0_17, %c0_18] : memref<32x16xf32, #tpu.memory_space<vmem>>, vector<32x16xf32>
    %cst_19 = arith.constant dense<0.000000e+00> : vector<64x16xf32>
    %20 = tpu.matmul %18, %19, %cst_19 {dimension_numbers = #tpu.dot_dimension_numbers<[1], [0], [0], [1], [0, 0, 1, 1], [], []>} : vector<64x32xf32>, vector<32x16xf32>, vector<64x16xf32> -> vector<64x16xf32>
    %c0_20 = arith.constant 0 : index
    %c0_21 = arith.constant 0 : index
    %21 = vector.load %arg10[%c0_20, %c0_21] : memref<1x16xf32, #tpu.memory_space<vmem>>, vector<1x16xf32>
    %22 = vector.broadcast %21 : vector<1x16xf32> to vector<64x16xf32>
    %23 = arith.addf %20, %22 : vector<64x16xf32>
    %cst_22 = arith.constant 0.000000e+00 : f32
    %24 = vector.broadcast %cst_22 : f32 to vector<64x16xf32>
    %25 = arith.maximumf %23, %24 : vector<64x16xf32>
    %c0_23 = arith.constant 0 : index
    %c0_24 = arith.constant 0 : index
    %26 = vector.load %arg3[%c0_23, %c0_24] : memref<8x64xf32, #tpu.memory_space<vmem>>, vector<8x64xf32>
    %cst_25 = arith.constant dense<0.000000e+00> : vector<8x16xf32>
    %27 = tpu.matmul %26, %25, %cst_25 {dimension_numbers = #tpu.dot_dimension_numbers<[1], [0], [0], [1], [0, 0, 1, 1], [], []>} : vector<8x64xf32>, vector<64x16xf32>, vector<8x16xf32> -> vector<8x16xf32>
    %c0_26 = arith.constant 0 : index
    %c0_27 = arith.constant 0 : index
    %28 = vector.load %arg11[%c0_26, %c0_27] : memref<8x16xf32, #tpu.memory_space<vmem>>, vector<8x16xf32>
    tpu.vector_store %arg11[%c0_26, %c0_27], %27 {strides = array<i32>} : memref<8x16xf32, #tpu.memory_space<vmem>>, vector<8x16xf32>,
    return
  }
  func.func @transform_0(%arg0: i32) -> (i32, i32) {
    %c0_i32 = arith.constant 0 : i32
    %c0_i32_0 = arith.constant 0 : i32
    return %arg0, %c0_i32 : i32, i32
  }
  func.func @transform_1(%arg0: i32) -> (i32, i32) {
    %c0_i32 = arith.constant 0 : i32
    %c0_i32_0 = arith.constant 0 : i32
    return %arg0, %c0_i32 : i32, i32
  }
  func.func @transform_2(%arg0: i32) -> (i32, i32) {
    %c0_i32 = arith.constant 0 : i32
    %c0_i32_0 = arith.constant 0 : i32
    %c0_i32_1 = arith.constant 0 : i32
    return %c0_i32, %c0_i32_0 : i32, i32
  }
  func.func @transform_3(%arg0: i32) -> (i32, i32) {
    %c0_i32 = arith.constant 0 : i32
    %c0_i32_0 = arith.constant 0 : i32
    %c0_i32_1 = arith.constant 0 : i32
    return %c0_i32, %c0_i32_0 : i32, i32
  }
  func.func @transform_4(%arg0: i32) -> (i32, i32) {
    %c0_i32 = arith.constant 0 : i32
    %c0_i32_0 = arith.constant 0 : i32
    %c0_i32_1 = arith.constant 0 : i32
    return %c0_i32, %c0_i32_0 : i32, i32
  }
  func.func @transform_5(%arg0: i32) -> (i32, i32) {
    %c0_i32 = arith.constant 0 : i32
    %c0_i32_0 = arith.constant 0 : i32
    %c0_i32_1 = arith.constant 0 : i32
    return %c0_i32, %c0_i32_0 : i32, i32
  }
  func.func @transform_6(%arg0: i32) -> (i32, i32) {
    %c0_i32 = arith.constant 0 : i32
    %c0_i32_0 = arith.constant 0 : i32
    %c0_i32_1 = arith.constant 0 : i32
    return %c0_i32, %c0_i32_0 : i32, i32
  }
  func.func @transform_7(%arg0: i32) -> (i32, i32) {
    %c0_i32 = arith.constant 0 : i32
    %c0_i32_0 = arith.constant 0 : i32
    %c0_i32_1 = arith.constant 0 : i32
    return %c0_i32, %c0_i32_0 : i32, i32
  }
  func.func @transform_8(%arg0: i32) -> (i32, i32) {
    %c0_i32 = arith.constant 0 : i32
    %c0_i32_0 = arith.constant 0 : i32
    %c0_i32_1 = arith.constant 0 : i32
    return %c0_i32, %c0_i32_0 : i32, i32
  }
  func.func @transform_9(%arg0: i32) -> (i32, i32) {
    %c0_i32 = arith.constant 0 : i32
    %c0_i32_0 = arith.constant 0 : i32
    %c0_i32_1 = arith.constant 0 : i32
    return %c0_i32, %c0_i32_0 : i32, i32
  }
  func.func @transform_10(%arg0: i32) -> (i32, i32) {
    %c0_i32 = arith.constant 0 : i32
    %c0_i32_0 = arith.constant 0 : i32
    return %arg0, %c0_i32 : i32, i32
  }
}

</mosaic_0001>

<llo_original>
// kernel: tpu_custom_call.1
$region0: #{tpu_custom_call.1}
  #allocation0 [shape = 'u32[]', space=smem, size = 0x4, offset = 0x4, fixed_abs, tag = 'smem constant byte address 0x4 - core index']
  #allocation1 [shape = 'u32[144,128]{1,0:T(1,128)}', space=vmem, size = 0x12000, scoped, tag = 'internal scratch']
  %s0 = inlined_call_operand.vmem [shape: f32[128,4], index: 0, kind: input, shape index: {}]
  %s1 = inlined_call_operand.vmem [shape: f32[128,4], index: 1, kind: input, shape index: {}]
  %s2 = inlined_call_operand.vmem [shape: f32[8,64], index: 2, kind: input, shape index: {}]
  %s3 = inlined_call_operand.vmem [shape: f32[4,32], index: 3, kind: input, shape index: {}]
  %s4 = inlined_call_operand.vmem [shape: f32[4,32], index: 4, kind: input, shape index: {}]
  %s5 = inlined_call_operand.vmem [shape: f32[1,32], index: 5, kind: input, shape index: {}]
  %s6 = inlined_call_operand.vmem [shape: f32[32,32], index: 6, kind: input, shape index: {}]
  %s7 = inlined_call_operand.vmem [shape: f32[1,32], index: 7, kind: input, shape index: {}]
  %s8 = inlined_call_operand.vmem [shape: f32[32,16], index: 8, kind: input, shape index: {}]
  %s9 = inlined_call_operand.vmem [shape: f32[1,16], index: 9, kind: input, shape index: {}]
  %s10 = inlined_call_operand.hbm [shape: f32[16,16], index: 10, kind: output, shape index: {}]
  %s11 = sld [smem:[#allocation0]]
  $region73: #{tpu_custom_call.1} parent=0
    _
  %s13 = ssub.s32 1, %s11
  %s14 = scalar_select 0, %s13, %s11
  $region1: #{tpu_custom_call.1} parent=0
    #allocation2 [shape = 'u8[8192]{0}', space=vmem, size = 0x2000, scoped, tag = 'output window, operand 0']
    #allocation3 [shape = 's32[2]{0}', space=sflag, size = 0x8, scoped, tag = 'scoped memory for tpu_custom_call.1']
    %15 = vsyncpa [#allocation3], 0
    %s16 = scalar_lea.sflag [#allocation3], 1
    %17 = vsyncpa %s16, 0
    loop: start=0, step=1, limit=4
    $region2: #{tpu_custom_call.1} parent=1 // loop_pre_header
      _
    $region3: #{tpu_custom_call.1} parent=1 // loop_header
      %s19 = sphi 0, %s23
      %p20 = scmp.ge.s32.totalorder %s19, 4
      %s29 = sphi 0, %s31
      %s32 = sphi 0, %s29
      %s33 = sphi 0, %s32
      %s49 = sphi 0, %s33
      %s55 = sphi 0, %s57
      %s58 = sphi 0, %s55
      %s59 = sphi 0, %s58
      %s75 = sphi 0, %s59
      %s79 = sphi 0, %s79
      %s81 = sphi 0, %s79
      %s82 = sphi 0, %s81
      %s96 = sphi 0, %s82
      %s100 = sphi 0, %s100
      %s102 = sphi 0, %s100
      %s103 = sphi 0, %s102
      %s117 = sphi 0, %s103
      %s121 = sphi 0, %s121
      %s123 = sphi 0, %s121
      %s124 = sphi 0, %s123
      %s138 = sphi 0, %s124
      %s142 = sphi 0, %s142
      %s144 = sphi 0, %s142
      %s145 = sphi 0, %s144
      %s159 = sphi 0, %s145
      %s163 = sphi 0, %s163
      %s165 = sphi 0, %s163
      %s166 = sphi 0, %s165
      %s180 = sphi 0, %s166
      %s184 = sphi 0, %s184
      %s186 = sphi 0, %s184
      %s187 = sphi 0, %s186
      %s201 = sphi 0, %s187
      %s205 = sphi 0, %s205
      %s207 = sphi 0, %s205
      %s208 = sphi 0, %s207
      %s222 = sphi 0, %s208
      %s226 = sphi 0, %s226
      %s228 = sphi 0, %s226
      %s229 = sphi 0, %s228
      %s243 = sphi 0, %s229
      %s249 = sphi 0, %s251
      %s252 = sphi 0, %s249
      %s253 = sphi 0, %s252
      %s269 = sphi 0, %s253
    $region4: #{tpu_custom_call.1} parent=1 // loop_header_branch
      %22 = sbr.rel (%p20) target = $region8
    $region5: #{tpu_custom_call.1} parent=1 // loop_body
      %s24 = ssub.s32 %s19, 1
      %s25 = ssub.s32 %s19, 2
      %s26 = sadd.s32 %s19, 1
      %s27 = ssub.s32 %s19, %s26
      %p28 = scmp.eq.s32.totalorder %s27, 0
      %s30 = sadd.s32 %s29, 1
      %s31 = scalar_select %p28, %s29, %s30
      %p34 = pneg %p28
      %p35 = scmp.eq.s32.totalorder %s19, 1
      %p36 = por %p34, %p35
      %p37 = scmp.ne.s32.totalorder %s29, %s32
      %p38 = scmp.eq.s32.totalorder %s19, 0
      %p39 = por %p37, %p38
      %p40 = scmp.ne.s32.totalorder %s29, %s32
      %p41 = scmp.eq.s32.totalorder %s24, 1
      %p42 = por %p40, %p41
      %p43 = scmp.ne.s32.totalorder %s32, %s33
      %p44 = scmp.eq.s32.totalorder %s24, 0
      %p45 = por %p43, %p44
      %p46 = scmp.ne.s32.totalorder %s32, %s33
      %p47 = scmp.eq.s32.totalorder %s25, 1
      %p48 = por %p46, %p47
      %p50 = scmp.ne.s32.totalorder %s33, %s49
      %p51 = scmp.eq.s32.totalorder %s25, 0
      %p52 = por %p50, %p51
      %s53 = ssub.s32 %s19, %s26
      %p54 = scmp.eq.s32.totalorder %s53, 0
      %s56 = sadd.s32 %s55, 1
      %s57 = scalar_select %p54, %s55, %s56
      %p60 = pneg %p54
      %p61 = scmp.eq.s32.totalorder %s19, 1
      %p62 = por %p60, %p61
      %p63 = scmp.ne.s32.totalorder %s55, %s58
      %p64 = scmp.eq.s32.totalorder %s19, 0
      %p65 = por %p63, %p64
      %p66 = scmp.ne.s32.totalorder %s55, %s58
      %p67 = scmp.eq.s32.totalorder %s24, 1
      %p68 = por %p66, %p67
      %p69 = scmp.ne.s32.totalorder %s58, %s59
      %p70 = scmp.eq.s32.totalorder %s24, 0
      %p71 = por %p69, %p70
      %p72 = scmp.ne.s32.totalorder %s58, %s59
      %p73 = scmp.eq.s32.totalorder %s25, 1
      %p74 = por %p72, %p73
      %p76 = scmp.ne.s32.totalorder %s59, %s75
      %p77 = scmp.eq.s32.totalorder %s25, 0
      %p78 = por %p76, %p77
      %s80 = sadd.s32 %s79, 1
      %p83 = scmp.eq.s32.totalorder %s19, 1
      %p84 = scmp.ne.s32.totalorder %s79, %s81
      %p85 = scmp.eq.s32.totalorder %s19, 0
      %p86 = por %p84, %p85
      %p87 = scmp.ne.s32.totalorder %s79, %s81
      %p88 = scmp.eq.s32.totalorder %s24, 1
      %p89 = por %p87, %p88
      %p90 = scmp.ne.s32.totalorder %s81, %s82
      %p91 = scmp.eq.s32.totalorder %s24, 0
      %p92 = por %p90, %p91
      %p93 = scmp.ne.s32.totalorder %s81, %s82
      %p94 = scmp.eq.s32.totalorder %s25, 1
      %p95 = por %p93, %p94
      %p97 = scmp.ne.s32.totalorder %s82, %s96
      %p98 = scmp.eq.s32.totalorder %s25, 0
      %p99 = por %p97, %p98
      %s101 = sadd.s32 %s100, 1
      %p104 = scmp.eq.s32.totalorder %s19, 1
      %p105 = scmp.ne.s32.totalorder %s100, %s102
      %p106 = scmp.eq.s32.totalorder %s19, 0
      %p107 = por %p105, %p106
      %p108 = scmp.ne.s32.totalorder %s100, %s102
      %p109 = scmp.eq.s32.totalorder %s24, 1
      %p110 = por %p108, %p109
      %p111 = scmp.ne.s32.totalorder %s102, %s103
      %p112 = scmp.eq.s32.totalorder %s24, 0
      %p113 = por %p111, %p112
      %p114 = scmp.ne.s32.totalorder %s102, %s103
      %p115 = scmp.eq.s32.totalorder %s25, 1
      %p116 = por %p114, %p115
      %p118 = scmp.ne.s32.totalorder %s103, %s117
      %p119 = scmp.eq.s32.totalorder %s25, 0
      %p120 = por %p118, %p119
      %s122 = sadd.s32 %s121, 1
      %p125 = scmp.eq.s32.totalorder %s19, 1
      %p126 = scmp.ne.s32.totalorder %s121, %s123
      %p127 = scmp.eq.s32.totalorder %s19, 0
      %p128 = por %p126, %p127
      %p129 = scmp.ne.s32.totalorder %s121, %s123
      %p130 = scmp.eq.s32.totalorder %s24, 1
      %p131 = por %p129, %p130
      %p132 = scmp.ne.s32.totalorder %s123, %s124
      %p133 = scmp.eq.s32.totalorder %s24, 0
      %p134 = por %p132, %p133
      %p135 = scmp.ne.s32.totalorder %s123, %s124
      %p136 = scmp.eq.s32.totalorder %s25, 1
      %p137 = por %p135, %p136
      %p139 = scmp.ne.s32.totalorder %s124, %s138
      %p140 = scmp.eq.s32.totalorder %s25, 0
      %p141 = por %p139, %p140
      %s143 = sadd.s32 %s142, 1
      %p146 = scmp.eq.s32.totalorder %s19, 1
      %p147 = scmp.ne.s32.totalorder %s142, %s144
      %p148 = scmp.eq.s32.totalorder %s19, 0
      %p149 = por %p147, %p148
      %p150 = scmp.ne.s32.totalorder %s142, %s144
      %p151 = scmp.eq.s32.totalorder %s24, 1
      %p152 = por %p150, %p151
      %p153 = scmp.ne.s32.totalorder %s144, %s145
      %p154 = scmp.eq.s32.totalorder %s24, 0
      %p155 = por %p153, %p154
      %p156 = scmp.ne.s32.totalorder %s144, %s145
      %p157 = scmp.eq.s32.totalorder %s25, 1
      %p158 = por %p156, %p157
      %p160 = scmp.ne.s32.totalorder %s145, %s159
      %p161 = scmp.eq.s32.totalorder %s25, 0
      %p162 = por %p160, %p161
      %s164 = sadd.s32 %s163, 1
      %p167 = scmp.eq.s32.totalorder %s19, 1
      %p168 = scmp.ne.s32.totalorder %s163, %s165
      %p169 = scmp.eq.s32.totalorder %s19, 0
      %p170 = por %p168, %p169
      %p171 = scmp.ne.s32.totalorder %s163, %s165
      %p172 = scmp.eq.s32.totalorder %s24, 1
      %p173 = por %p171, %p172
      %p174 = scmp.ne.s32.totalorder %s165, %s166
      %p175 = scmp.eq.s32.totalorder %s24, 0
      %p176 = por %p174, %p175
      %p177 = scmp.ne.s32.totalorder %s165, %s166
      %p178 = scmp.eq.s32.totalorder %s25, 1
      %p179 = por %p177, %p178
      %p181 = scmp.ne.s32.totalorder %s166, %s180
      %p182 = scmp.eq.s32.totalorder %s25, 0
      %p183 = por %p181, %p182
      %s185 = sadd.s32 %s184, 1
      %p188 = scmp.eq.s32.totalorder %s19, 1
      %p189 = scmp.ne.s32.totalorder %s184, %s186
      %p190 = scmp.eq.s32.totalorder %s19, 0
      %p191 = por %p189, %p190
      %p192 = scmp.ne.s32.totalorder %s184, %s186
      %p193 = scmp.eq.s32.totalorder %s24, 1
      %p194 = por %p192, %p193
      %p195 = scmp.ne.s32.totalorder %s186, %s187
      %p196 = scmp.eq.s32.totalorder %s24, 0
      %p197 = por %p195, %p196
      %p198 = scmp.ne.s32.totalorder %s186, %s187
      %p199 = scmp.eq.s32.totalorder %s25, 1
      %p200 = por %p198, %p199
      %p202 = scmp.ne.s32.totalorder %s187, %s201
      %p203 = scmp.eq.s32.totalorder %s25, 0
      %p204 = por %p202, %p203
      %s206 = sadd.s32 %s205, 1
      %p209 = scmp.eq.s32.totalorder %s19, 1
      %p210 = scmp.ne.s32.totalorder %s205, %s207
      %p211 = scmp.eq.s32.totalorder %s19, 0
      %p212 = por %p210, %p211
      %p213 = scmp.ne.s32.totalorder %s205, %s207
      %p214 = scmp.eq.s32.totalorder %s24, 1
      %p215 = por %p213, %p214
      %p216 = scmp.ne.s32.totalorder %s207, %s208
      %p217 = scmp.eq.s32.totalorder %s24, 0
      %p218 = por %p216, %p217
      %p219 = scmp.ne.s32.totalorder %s207, %s208
      %p220 = scmp.eq.s32.totalorder %s25, 1
      %p221 = por %p219, %p220
      %p223 = scmp.ne.s32.totalorder %s208, %s222
      %p224 = scmp.eq.s32.totalorder %s25, 0
      %p225 = por %p223, %p224
      %s227 = sadd.s32 %s226, 1
      %p230 = scmp.eq.s32.totalorder %s19, 1
      %p231 = scmp.ne.s32.totalorder %s226, %s228
      %p232 = scmp.eq.s32.totalorder %s19, 0
      %p233 = por %p231, %p232
      %p234 = scmp.ne.s32.totalorder %s226, %s228
      %p235 = scmp.eq.s32.totalorder %s24, 1
      %p236 = por %p234, %p235
      %p237 = scmp.ne.s32.totalorder %s228, %s229
      %p238 = scmp.eq.s32.totalorder %s24, 0
      %p239 = por %p237, %p238
      %p240 = scmp.ne.s32.totalorder %s228, %s229
      %p241 = scmp.eq.s32.totalorder %s25, 1
      %p242 = por %p240, %p241
      %p244 = scmp.ne.s32.totalorder %s229, %s243
      %p245 = scmp.eq.s32.totalorder %s25, 0
      %p246 = por %p244, %p245
      %s247 = ssub.s32 %s19, %s26
      %p248 = scmp.eq.s32.totalorder %s247, 0
      %s250 = sadd.s32 %s249, 1
      %s251 = scalar_select %p248, %s249, %s250
      %p254 = pneg %p248
      %p255 = scmp.eq.s32.totalorder %s19, 1
      %p256 = por %p254, %p255
      %p257 = scmp.ne.s32.totalorder %s249, %s252
      %p258 = scmp.eq.s32.totalorder %s19, 0
      %p259 = por %p257, %p258
      %p260 = scmp.ne.s32.totalorder %s249, %s252
      %p261 = scmp.eq.s32.totalorder %s24, 1
      %p262 = por %p260, %p261
      %p263 = scmp.ne.s32.totalorder %s252, %s253
      %p264 = scmp.eq.s32.totalorder %s24, 0
      %p265 = por %p263, %p264
      %p266 = scmp.ne.s32.totalorder %s252, %s253
      %p267 = scmp.eq.s32.totalorder %s25, 1
      %p268 = por %p266, %p267
      %p270 = scmp.ne.s32.totalorder %s253, %s269
      %p271 = scmp.eq.s32.totalorder %s25, 0
      %p272 = por %p270, %p271
      %p273 = scmp.le.s32.totalorder 1, %s19
      %p274 = scmp.lt.s32.totalorder %s19, 3
      %p275 = pnand %p273, %p274
      %p276 = pneg %p275
      // Predicated region
      $region9: #{tpu_custom_call.1} parent=5 // pred_check
        _
      $region10: #{tpu_custom_call.1} parent=5 // pred_check_branch
        %278 = sbr.rel (%p275) target = $region12
      $region11: #{tpu_custom_call.1} parent=5 // pred_region
        %s279 = ssub.s32 %s19, 1
        // Predicated region
        $region13: #{tpu_custom_call.1} parent=11 // pred_check
          %p280 = pneg %p92
        $region14: #{tpu_custom_call.1} parent=11 // pred_check_branch
          %282 = sbr.rel (%p280) target = $region16
        $region15: #{tpu_custom_call.1} parent=11 // pred_region
          _
        $region16: #{tpu_custom_call.1} parent=11 // pred_fallthru
          _
        // Predicated region
        $region17: #{tpu_custom_call.1} parent=11 // pred_check
          %p283 = pneg %p113
        $region18: #{tpu_custom_call.1} parent=11 // pred_check_branch
          %285 = sbr.rel (%p283) target = $region20
        $region19: #{tpu_custom_call.1} parent=11 // pred_region
          _
        $region20: #{tpu_custom_call.1} parent=11 // pred_fallthru
          _
        // Predicated region
        $region21: #{tpu_custom_call.1} parent=11 // pred_check
          %p286 = pneg %p134
        $region22: #{tpu_custom_call.1} parent=11 // pred_check_branch
          %288 = sbr.rel (%p286) target = $region24
        $region23: #{tpu_custom_call.1} parent=11 // pred_region
          _
        $region24: #{tpu_custom_call.1} parent=11 // pred_fallthru
          _
        // Predicated region
        $region25: #{tpu_custom_call.1} parent=11 // pred_check
          %p289 = pneg %p155
        $region26: #{tpu_custom_call.1} parent=11 // pred_check_branch
          %291 = sbr.rel (%p289) target = $region28
        $region27: #{tpu_custom_call.1} parent=11 // pred_region
          _
        $region28: #{tpu_custom_call.1} parent=11 // pred_fallthru
          _
        // Predicated region
        $region29: #{tpu_custom_call.1} parent=11 // pred_check
          %p292 = pneg %p176
        $region30: #{tpu_custom_call.1} parent=11 // pred_check_branch
          %294 = sbr.rel (%p292) target = $region32
        $region31: #{tpu_custom_call.1} parent=11 // pred_region
          _
        $region32: #{tpu_custom_call.1} parent=11 // pred_fallthru
          _
        // Predicated region
        $region33: #{tpu_custom_call.1} parent=11 // pred_check
          %p295 = pneg %p197
        $region34: #{tpu_custom_call.1} parent=11 // pred_check_branch
          %297 = sbr.rel (%p295) target = $region36
        $region35: #{tpu_custom_call.1} parent=11 // pred_region
          _
        $region36: #{tpu_custom_call.1} parent=11 // pred_fallthru
          _
        // Predicated region
        $region37: #{tpu_custom_call.1} parent=11 // pred_check
          %p298 = pneg %p218
        $region38: #{tpu_custom_call.1} parent=11 // pred_check_branch
          %300 = sbr.rel (%p298) target = $region40
        $region39: #{tpu_custom_call.1} parent=11 // pred_region
          _
        $region40: #{tpu_custom_call.1} parent=11 // pred_fallthru
          _
        // Predicated region
        $region41: #{tpu_custom_call.1} parent=11 // pred_check
          %p301 = pneg %p239
        $region42: #{tpu_custom_call.1} parent=11 // pred_check_branch
          %303 = sbr.rel (%p301) target = $region44
        $region43: #{tpu_custom_call.1} parent=11 // pred_region
          _
        $region44: #{tpu_custom_call.1} parent=11 // pred_fallthru
          _
      $region12: #{tpu_custom_call.1} parent=5 // pred_fallthru
        _
      %p304 = scmp.lt.s32.totalorder %s19, 2
      // Predicated region
      $region45: #{tpu_custom_call.1} parent=5 // pred_check
        %p305 = pneg %p304
      $region46: #{tpu_custom_call.1} parent=5 // pred_check_branch
        %307 = sbr.rel (%p305) target = $region48
      $region47: #{tpu_custom_call.1} parent=5 // pred_region
        // Predicated region
        $region49: #{tpu_custom_call.1} parent=47 // pred_check
          %p308 = pneg %p39
        $region50: #{tpu_custom_call.1} parent=47 // pred_check_branch
          %310 = sbr.rel (%p308) target = $region52
        $region51: #{tpu_custom_call.1} parent=47 // pred_region
          %s311 = smul.u32 8, %s19
          %p312 = scmp.lt.s32.totalorder %s311, 15
          %s313 = scalar_select %p312, %s311, 15
          %s314 = smul.addr %s313, 8
          %s315 = scalar_lea.vmem %s0, %s314
          %s316 = smul.u32 8, %s19
        $region52: #{tpu_custom_call.1} parent=47 // pred_fallthru
          _
        // Predicated region
        $region53: #{tpu_custom_call.1} parent=47 // pred_check
          %p317 = pneg %p65
        $region54: #{tpu_custom_call.1} parent=47 // pred_check_branch
          %319 = sbr.rel (%p317) target = $region56
        $region55: #{tpu_custom_call.1} parent=47 // pred_region
          %s320 = smul.u32 8, %s19
          %p321 = scmp.lt.s32.totalorder %s320, 15
          %s322 = scalar_select %p321, %s320, 15
          %s323 = smul.addr %s322, 8
          %s324 = scalar_lea.vmem %s1, %s323
          %s325 = smul.u32 8, %s19
        $region56: #{tpu_custom_call.1} parent=47 // pred_fallthru
          _
      $region48: #{tpu_custom_call.1} parent=5 // pred_fallthru
        _
      %p326 = scmp.le.s32.totalorder 1, %s19
      %p327 = scmp.lt.s32.totalorder %s19, 3
      %p328 = pnand %p326, %p327
      %p329 = pneg %p328
      // Predicated region
      $region57: #{tpu_custom_call.1} parent=5 // pred_check
        _
      $region58: #{tpu_custom_call.1} parent=5 // pred_check_branch
        %331 = sbr.rel (%p328) target = $region60
      $region59: #{tpu_custom_call.1} parent=5 // pred_region
        %s332 = ssub.s32 %s19, 1
        %s333 = smul.u32 8, %s24
        %p334 = scmp.lt.s32.totalorder %s333, 15
        %s335 = scalar_select %p334, %s333, 15
        %s336 = smul.addr %s335, 8
        %s337 = scalar_lea.vmem %s0, %s336
        %p338 = pneg %p45
        %p339 = pneg %p42
        %s340 = smul.u32 8, %s24
        %p341 = scmp.lt.s32.totalorder %s340, 15
        %s342 = scalar_select %p341, %s340, 15
        %s343 = smul.addr %s342, 8
        %s344 = scalar_lea.vmem %s1, %s343
        %p345 = pneg %p71
        %p346 = pneg %p68
        %p347 = pneg %p92
        %p348 = pneg %p89
        %p349 = pneg %p113
        %p350 = pneg %p110
        %p351 = pneg %p134
        %p352 = pneg %p131
        %p353 = pneg %p155
        %p354 = pneg %p152
        %p355 = pneg %p176
        %p356 = pneg %p173
        %p357 = pneg %p197
        %p358 = pneg %p194
        %p359 = pneg %p218
        %p360 = pneg %p215
        %p361 = pneg %p239
        %p362 = pneg %p236
        %p363 = pneg %p265
        %p364 = pneg %p262
        %s365 = sand.u32 %s252, 1
        %s366 = scalar_lea.sflag [#allocation3], %s365
        %s367 = sand.u32 %s252, 1
        %s368 = smul.addr %s367, 8
        %s369 = scalar_lea.vmem [#allocation2], %s368
        %s370 = smul.u32 8, %s24
        %p371 = scmp.lt.s32.totalorder %s370, 15
        %s372 = scalar_select %p371, %s370, 15
        %s373 = smul.addr %s372, 8
        %s374 = scalar_lea.vmem %s0, %s373
        %s375 = smul.u32 8, %s24
        %s376 = smul.u32 8, %s24
        %p377 = scmp.lt.s32.totalorder %s376, 15
        %s378 = scalar_select %p377, %s376, 15
        %s379 = smul.addr %s378, 8
        %s380 = scalar_lea.vmem %s1, %s379
        %s381 = smul.u32 8, %s24
        %v382 = vld [vmem:[%s374] sm:$0xff]
        %v383 = vld [vmem:[%s374 + $0x8] sm:$0xff]
        %v384 = vld [vmem:[%s374 + $0x10] sm:$0xff]
        %v385 = vld [vmem:[%s374 + $0x18] sm:$0xff]
        %v386 = vld [vmem:[%s374 + $0x20] sm:$0xff]
        %v387 = vld [vmem:[%s374 + $0x28] sm:$0xff]
        %v388 = vld [vmem:[%s374 + $0x30] sm:$0xff]
        %v389 = vld [vmem:[%s374 + $0x38] sm:$0xff]
        %v390 = vld [vmem:[%s380] sm:$0xff]
        %v391 = vld [vmem:[%s380 + $0x8] sm:$0xff]
        %v392 = vld [vmem:[%s380 + $0x10] sm:$0xff]
        %v393 = vld [vmem:[%s380 + $0x18] sm:$0xff]
        %v394 = vld [vmem:[%s380 + $0x20] sm:$0xff]
        %v395 = vld [vmem:[%s380 + $0x28] sm:$0xff]
        %v396 = vld [vmem:[%s380 + $0x30] sm:$0xff]
        %v397 = vld [vmem:[%s380 + $0x38] sm:$0xff]
        %v398 = vld [vmem:[%s3] sm:$0xf]
        %v399 = vld [vmem:[%s4] sm:$0xf]
        %vm400 = vcmask 31744
        %v402 = vsel %vm400, %v390, 0
        %v405 = vsel %vm400, %v391, 0
        %v408 = vsel %vm400, %v392, 0
        %v411 = vsel %vm400, %v393, 0
        %v414 = vsel %vm400, %v394, 0
        %v417 = vsel %vm400, %v395, 0
        %v420 = vsel %vm400, %v396, 0
        %v423 = vsel %vm400, %v397, 0
        %vm425 = vcmask 1043456
        %v427 = vsel %vm425, %v399, 0
        %429 = vmatprep.subr.mxu0 0.0
        %430 = vmatpush1.msra.mxu0 %v427
        %431 = vmatprep.subr.mxu0 0.0
        %432 = vmatpush1.msra.mxu0 0.0
        %433 = vmatprep.subr.mxu0 0.0
        %434 = vmatpush1.msra.mxu0 0.0
        %435 = vmatprep.subr.mxu0 0.0
        %436 = vmatpush1.msra.mxu0 0.0
        %437 = vmatprep.subr.mxu0 0.0
        %438 = vmatpush1.msra.mxu0 0.0
        %439 = vmatprep.subr.mxu0 0.0
        %440 = vmatpush1.msra.mxu0 0.0
        %441 = vmatprep.subr.mxu0 0.0
        %442 = vmatpush1.msra.mxu0 0.0
        %443 = vmatprep.subr.mxu0 0.0
        %444 = vmatpush1.msra.mxu0 0.0
        %445 = vmatprep.subr.mxu0 0.0
        %446 = vmatpush1.msra.mxu0 0.0
        %447 = vmatprep.subr.mxu0 0.0
        %448 = vmatpush1.msra.mxu0 0.0
        %449 = vmatprep.subr.mxu0 0.0
        %450 = vmatpush1.msra.mxu0 0.0
        %451 = vmatprep.subr.mxu0 0.0
        %452 = vmatpush1.msra.mxu0 0.0
        %453 = vmatprep.subr.mxu0 0.0
        %454 = vmatpush1.msra.mxu0 0.0
        %455 = vmatprep.subr.mxu0 0.0
        %456 = vmatpush1.msra.mxu0 0.0
        %457 = vmatprep.subr.mxu0 0.0
        %458 = vmatpush1.msra.mxu0 0.0
        %459 = vmatprep.subr.mxu0 0.0
        %460 = vmatpush1.msra.mxu0 0.0
        %461 = vmatprep.subr.mxu0 0.0
        %462 = vmatpush1.msra.mxu0 0.0
        %463 = vmatprep.subr.mxu0 0.0
        %464 = vmatpush1.msra.mxu0 0.0
        %465 = vmatprep.subr.mxu0 0.0
        %466 = vmatpush1.msra.mxu0 0.0
        %467 = vmatprep.subr.mxu0 0.0
        %468 = vmatpush1.msra.mxu0 0.0
        %469 = vmatprep.subr.mxu0 0.0
        %470 = vmatpush1.msra.mxu0 0.0
        %471 = vmatprep.subr.mxu0 0.0
        %472 = vmatpush1.msra.mxu0 0.0
        %473 = vmatprep.subr.mxu0 0.0
        %474 = vmatpush1.msra.mxu0 0.0
        %475 = vmatprep.subr.mxu0 0.0
        %476 = vmatpush1.msra.mxu0 0.0
        %477 = vmatprep.subr.mxu0 0.0
        %478 = vmatpush1.msra.mxu0 0.0
        %479 = vmatprep.subr.mxu0 0.0
        %480 = vmatpush1.msra.mxu0 0.0
        %481 = vmatprep.subr.mxu0 0.0
        %482 = vmatpush1.msra.mxu0 0.0
        %483 = vmatprep.subr.mxu0 0.0
        %484 = vmatpush1.msra.mxu0 0.0
        %485 = vmatprep.subr.mxu0 0.0
        %486 = vmatpush1.msra.mxu0 0.0
        %487 = vmatprep.subr.mxu0 0.0
        %488 = vmatpush1.msra.mxu0 0.0
        %489 = vmatprep.subr.mxu0 0.0
        %490 = vmatpush1.msra.mxu0 0.0
        %491 = vmatprep.subr.mxu0 0.0
        %492 = vmatpush1.msra.mxu0 0.0
        %493 = vmatprep.mubr.f32.mxu0 0.0
        %494 = vmatmul.mubr.f32.gmra.mrb[0].mxu0 %v402
        %v495 = vpop.f32.mrb[0].mxu0
        %v496 = vadd.f32 0.0, %v495
        %v497 = vpop.f32.mrb[0].mxu0
        %498 = vmatprep.mubr.f32.mxu0 0.0
        %499 = vmatmul.mubr.f32.gmra.mrb[0].mxu0 %v405
        %v500 = vpop.f32.mrb[0].mxu0
        %v501 = vadd.f32 0.0, %v500
        %v502 = vpop.f32.mrb[0].mxu0
        %503 = vmatprep.mubr.f32.mxu0 0.0
        %504 = vmatmul.mubr.f32.gmra.mrb[0].mxu0 %v408
        %v505 = vpop.f32.mrb[0].mxu0
        %v506 = vadd.f32 0.0, %v505
        %v507 = vpop.f32.mrb[0].mxu0
        %508 = vmatprep.mubr.f32.mxu0 0.0
        %509 = vmatmul.mubr.f32.gmra.mrb[0].mxu0 %v411
        %v510 = vpop.f32.mrb[0].mxu0
        %v511 = vadd.f32 0.0, %v510
        %v512 = vpop.f32.mrb[0].mxu0
        %513 = vmatprep.mubr.f32.mxu0 0.0
        %514 = vmatmul.mubr.f32.gmra.mrb[0].mxu0 %v414
        %v515 = vpop.f32.mrb[0].mxu0
        %v516 = vadd.f32 0.0, %v515
        %v517 = vpop.f32.mrb[0].mxu0
        %518 = vmatprep.mubr.f32.mxu0 0.0
        %519 = vmatmul.mubr.f32.gmra.mrb[0].mxu0 %v417
        %v520 = vpop.f32.mrb[0].mxu0
        %v521 = vadd.f32 0.0, %v520
        %v522 = vpop.f32.mrb[0].mxu0
        %523 = vmatprep.mubr.f32.mxu0 0.0
        %524 = vmatmul.mubr.f32.gmra.mrb[0].mxu0 %v420
        %v525 = vpop.f32.mrb[0].mxu0
        %v526 = vadd.f32 0.0, %v525
        %v527 = vpop.f32.mrb[0].mxu0
        %528 = vmatprep.mubr.f32.mxu0 0.0
        %529 = vmatmul.mubr.f32.gmra.mrb[0].mxu0 %v423
        %v530 = vpop.f32.mrb[0].mxu0
        %v531 = vadd.f32 0.0, %v530
        %v532 = vpop.f32.mrb[0].mxu0
        %533 = vdwg.mxu0
        %v535 = vsel %vm400, %v382, 0
        %v538 = vsel %vm400, %v383, 0
        %v541 = vsel %vm400, %v384, 0
        %v544 = vsel %vm400, %v385, 0
        %v547 = vsel %vm400, %v386, 0
        %v550 = vsel %vm400, %v387, 0
        %v553 = vsel %vm400, %v388, 0
        %v556 = vsel %vm400, %v389, 0
        %v559 = vsel %vm425, %v398, 0
        %561 = vmatprep.subr.mxu0 0.0
        %562 = vmatpush1.msra.mxu0 %v559
        %563 = vmatprep.subr.mxu0 0.0
        %564 = vmatpush1.msra.mxu0 0.0
        %565 = vmatprep.subr.mxu0 0.0
        %566 = vmatpush1.msra.mxu0 0.0
        %567 = vmatprep.subr.mxu0 0.0
        %568 = vmatpush1.msra.mxu0 0.0
        %569 = vmatprep.subr.mxu0 0.0
        %570 = vmatpush1.msra.mxu0 0.0
        %571 = vmatprep.subr.mxu0 0.0
        %572 = vmatpush1.msra.mxu0 0.0
        %573 = vmatprep.subr.mxu0 0.0
        %574 = vmatpush1.msra.mxu0 0.0
        %575 = vmatprep.subr.mxu0 0.0
        %576 = vmatpush1.msra.mxu0 0.0
        %577 = vmatprep.subr.mxu0 0.0
        %578 = vmatpush1.msra.mxu0 0.0
        %579 = vmatprep.subr.mxu0 0.0
        %580 = vmatpush1.msra.mxu0 0.0
        %581 = vmatprep.subr.mxu0 0.0
        %582 = vmatpush1.msra.mxu0 0.0
        %583 = vmatprep.subr.mxu0 0.0
        %584 = vmatpush1.msra.mxu0 0.0
        %585 = vmatprep.subr.mxu0 0.0
        %586 = vmatpush1.msra.mxu0 0.0
        %587 = vmatprep.subr.mxu0 0.0
        %588 = vmatpush1.msra.mxu0 0.0
        %589 = vmatprep.subr.mxu0 0.0
        %590 = vmatpush1.msra.mxu0 0.0
        %591 = vmatprep.subr.mxu0 0.0
        %592 = vmatpush1.msra.mxu0 0.0
        %593 = vmatprep.subr.mxu0 0.0
        %594 = vmatpush1.msra.mxu0 0.0
        %595 = vmatprep.subr.mxu0 0.0
        %596 = vmatpush1.msra.mxu0 0.0
        %597 = vmatprep.subr.mxu0 0.0
        %598 = vmatpush1.msra.mxu0 0.0
        %599 = vmatprep.subr.mxu0 0.0
        %600 = vmatpush1.msra.mxu0 0.0
        %601 = vmatprep.subr.mxu0 0.0
        %602 = vmatpush1.msra.mxu0 0.0
        %603 = vmatprep.subr.mxu0 0.0
        %604 = vmatpush1.msra.mxu0 0.0
        %605 = vmatprep.subr.mxu0 0.0
        %606 = vmatpush1.msra.mxu0 0.0
        %607 = vmatprep.subr.mxu0 0.0
        %608 = vmatpush1.msra.mxu0 0.0
        %609 = vmatprep.subr.mxu0 0.0
        %610 = vmatpush1.msra.mxu0 0.0
        %611 = vmatprep.subr.mxu0 0.0
        %612 = vmatpush1.msra.mxu0 0.0
        %613 = vmatprep.subr.mxu0 0.0
        %614 = vmatpush1.msra.mxu0 0.0
        %615 = vmatprep.subr.mxu0 0.0
        %616 = vmatpush1.msra.mxu0 0.0
        %617 = vmatprep.subr.mxu0 0.0
        %618 = vmatpush1.msra.mxu0 0.0
        %619 = vmatprep.subr.mxu0 0.0
        %620 = vmatpush1.msra.mxu0 0.0
        %621 = vmatprep.subr.mxu0 0.0
        %622 = vmatpush1.msra.mxu0 0.0
        %623 = vmatprep.subr.mxu0 0.0
        %624 = vmatpush1.msra.mxu0 0.0
        %625 = vmatprep.mubr.f32.mxu0 0.0
        %626 = vmatmul.mubr.f32.gmra.mrb[0].mxu0 %v535
        %v627 = vpop.f32.mrb[0].mxu0
        %v628 = vadd.f32 %v496, %v627
        %v629 = vpop.f32.mrb[0].mxu0
        %630 = vmatprep.mubr.f32.mxu0 0.0
        %631 = vmatmul.mubr.f32.gmra.mrb[0].mxu0 %v538
        %v632 = vpop.f32.mrb[0].mxu0
        %v633 = vadd.f32 %v501, %v632
        %v634 = vpop.f32.mrb[0].mxu0
        %635 = vmatprep.mubr.f32.mxu0 0.0
        %636 = vmatmul.mubr.f32.gmra.mrb[0].mxu0 %v541
        %v637 = vpop.f32.mrb[0].mxu0
        %v638 = vadd.f32 %v506, %v637
        %v639 = vpop.f32.mrb[0].mxu0
        %640 = vmatprep.mubr.f32.mxu0 0.0
        %641 = vmatmul.mubr.f32.gmra.mrb[0].mxu0 %v544
        %v642 = vpop.f32.mrb[0].mxu0
        %v643 = vadd.f32 %v511, %v642
        %v644 = vpop.f32.mrb[0].mxu0
        %645 = vmatprep.mubr.f32.mxu0 0.0
        %646 = vmatmul.mubr.f32.gmra.mrb[0].mxu0 %v547
        %v647 = vpop.f32.mrb[0].mxu0
        %v648 = vadd.f32 %v516, %v647
        %v649 = vpop.f32.mrb[0].mxu0
        %650 = vmatprep.mubr.f32.mxu0 0.0
        %651 = vmatmul.mubr.f32.gmra.mrb[0].mxu0 %v550
        %v652 = vpop.f32.mrb[0].mxu0
        %v653 = vadd.f32 %v521, %v652
        %v654 = vpop.f32.mrb[0].mxu0
        %655 = vmatprep.mubr.f32.mxu0 0.0
        %656 = vmatmul.mubr.f32.gmra.mrb[0].mxu0 %v553
        %v657 = vpop.f32.mrb[0].mxu0
        %v658 = vadd.f32 %v526, %v657
        %v659 = vpop.f32.mrb[0].mxu0
        %660 = vmatprep.mubr.f32.mxu0 0.0
        %661 = vmatmul.mubr.f32.gmra.mrb[0].mxu0 %v556
        %v662 = vpop.f32.mrb[0].mxu0
        %v663 = vadd.f32 %v531, %v662
        %v664 = vpop.f32.mrb[0].mxu0
        %665 = vdwg.mxu0
        %v666 = vld [vmem:[%s5] sm:$0x1]
        %v668 = vlaneseq
        %v669 = vshrl.u32 %v668, 7
        %v670 = vsub.s32 0, %v669
        %v671 = vrot.slane %v666, %v670
        %v673 = vadd.f32 %v628, %v671
        %v674 = vadd.f32 %v633, %v671
        %v675 = vadd.f32 %v638, %v671
        %v676 = vadd.f32 %v643, %v671
        %v677 = vadd.f32 %v648, %v671
        %v678 = vadd.f32 %v653, %v671
        %v679 = vadd.f32 %v658, %v671
        %v680 = vadd.f32 %v663, %v671
        %v681 = vmax.f32 %v673, 0.0
        %v682 = vmax.f32 %v674, 0.0
        %v683 = vmax.f32 %v675, 0.0
        %v684 = vmax.f32 %v676, 0.0
        %v685 = vmax.f32 %v677, 0.0
        %v686 = vmax.f32 %v678, 0.0
        %v687 = vmax.f32 %v679, 0.0
        %v688 = vmax.f32 %v680, 0.0
        %v689 = vld [vmem:[%s6] sm:$0xff]
        %v690 = vld [vmem:[%s6 + $0x8] sm:$0xff]
        %v691 = vld [vmem:[%s6 + $0x10] sm:$0xff]
        %v692 = vld [vmem:[%s6 + $0x18] sm:$0xff]
        %v693 = vld [vmem:[%s7] sm:$0x1]
        %v695 = vlaneseq
        %v696 = vshrl.u32 %v695, 7
        %v697 = vsub.s32 0, %v696
        %v698 = vrot.slane %v693, %v697
        %vm700 = vcmask 261120
        %v702 = vsel %vm700, %v681, 0
        %v705 = vsel %vm700, %v682, 0
        %v708 = vsel %vm700, %v683, 0
        %v711 = vsel %vm700, %v684, 0
        %v714 = vsel %vm700, %v685, 0
        %v717 = vsel %vm700, %v686, 0
        %v720 = vsel %vm700, %v687, 0
        %v723 = vsel %vm700, %v688, 0
        %725 = vmatprep.subr.mxu0 0.0
        %726 = vmatpush1.msra.mxu0 %v689
        %727 = vmatprep.subr.mxu0 0.0
        %728 = vmatpush1.msra.mxu0 %v690
        %729 = vmatprep.subr.mxu0 0.0
        %730 = vmatpush1.msra.mxu0 %v691
        %731 = vmatprep.subr.mxu0 0.0
        %732 = vmatpush1.msra.mxu0 %v692
        %733 = vmatprep.subr.mxu0 0.0
        %734 = vmatpush1.msra.mxu0 0.0
        %735 = vmatprep.subr.mxu0 0.0
        %736 = vmatpush1.msra.mxu0 0.0
        %737 = vmatprep.subr.mxu0 0.0
        %738 = vmatpush1.msra.mxu0 0.0
        %739 = vmatprep.subr.mxu0 0.0
        %740 = vmatpush1.msra.mxu0 0.0
        %741 = vmatprep.subr.mxu0 0.0
        %742 = vmatpush1.msra.mxu0 0.0
        %743 = vmatprep.subr.mxu0 0.0
        %744 = vmatpush1.msra.mxu0 0.0
        %745 = vmatprep.subr.mxu0 0.0
        %746 = vmatpush1.msra.mxu0 0.0
        %747 = vmatprep.subr.mxu0 0.0
        %748 = vmatpush1.msra.mxu0 0.0
        %749 = vmatprep.subr.mxu0 0.0
        %750 = vmatpush1.msra.mxu0 0.0
        %751 = vmatprep.subr.mxu0 0.0
        %752 = vmatpush1.msra.mxu0 0.0
        %753 = vmatprep.subr.mxu0 0.0
        %754 = vmatpush1.msra.mxu0 0.0
        %755 = vmatprep.subr.mxu0 0.0
        %756 = vmatpush1.msra.mxu0 0.0
        %757 = vmatprep.subr.mxu0 0.0
        %758 = vmatpush1.msra.mxu0 0.0
        %759 = vmatprep.subr.mxu0 0.0
        %760 = vmatpush1.msra.mxu0 0.0
        %761 = vmatprep.subr.mxu0 0.0
        %762 = vmatpush1.msra.mxu0 0.0
        %763 = vmatprep.subr.mxu0 0.0
        %764 = vmatpush1.msra.mxu0 0.0
        %765 = vmatprep.subr.mxu0 0.0
        %766 = vmatpush1.msra.mxu0 0.0
        %767 = vmatprep.subr.mxu0 0.0
        %768 = vmatpush1.msra.mxu0 0.0
        %769 = vmatprep.subr.mxu0 0.0
        %770 = vmatpush1.msra.mxu0 0.0
        %771 = vmatprep.subr.mxu0 0.0
        %772 = vmatpush1.msra.mxu0 0.0
        %773 = vmatprep.subr.mxu0 0.0
        %774 = vmatpush1.msra.mxu0 0.0
        %775 = vmatprep.subr.mxu0 0.0
        %776 = vmatpush1.msra.mxu0 0.0
        %777 = vmatprep.subr.mxu0 0.0
        %778 = vmatpush1.msra.mxu0 0.0
        %779 = vmatprep.subr.mxu0 0.0
        %780 = vmatpush1.msra.mxu0 0.0
        %781 = vmatprep.subr.mxu0 0.0
        %782 = vmatpush1.msra.mxu0 0.0
        %783 = vmatprep.subr.mxu0 0.0
        %784 = vmatpush1.msra.mxu0 0.0
        %785 = vmatprep.subr.mxu0 0.0
        %786 = vmatpush1.msra.mxu0 0.0
        %787 = vmatprep.subr.mxu0 0.0
        %788 = vmatpush1.msra.mxu0 0.0
        %789 = vmatprep.mubr.f32.mxu0 0.0
        %790 = vmatmul.mubr.f32.gmra.mrb[0].mxu0 %v702
        %v791 = vpop.f32.mrb[0].mxu0
        %v792 = vadd.f32 %v698, %v791
        %v793 = vpop.f32.mrb[0].mxu0
        %794 = vmatprep.mubr.f32.mxu0 0.0
        %795 = vmatmul.mubr.f32.gmra.mrb[0].mxu0 %v705
        %v796 = vpop.f32.mrb[0].mxu0
        %v797 = vadd.f32 %v698, %v796
        %v798 = vpop.f32.mrb[0].mxu0
        %799 = vmatprep.mubr.f32.mxu0 0.0
        %800 = vmatmul.mubr.f32.gmra.mrb[0].mxu0 %v708
        %v801 = vpop.f32.mrb[0].mxu0
        %v802 = vadd.f32 %v698, %v801
        %v803 = vpop.f32.mrb[0].mxu0
        %804 = vmatprep.mubr.f32.mxu0 0.0
        %805 = vmatmul.mubr.f32.gmra.mrb[0].mxu0 %v711
        %v806 = vpop.f32.mrb[0].mxu0
        %v807 = vadd.f32 %v698, %v806
        %v808 = vpop.f32.mrb[0].mxu0
        %809 = vmatprep.mubr.f32.mxu0 0.0
        %810 = vmatmul.mubr.f32.gmra.mrb[0].mxu0 %v714
        %v811 = vpop.f32.mrb[0].mxu0
        %v812 = vadd.f32 %v698, %v811
        %v813 = vpop.f32.mrb[0].mxu0
        %814 = vmatprep.mubr.f32.mxu0 0.0
        %815 = vmatmul.mubr.f32.gmra.mrb[0].mxu0 %v717
        %v816 = vpop.f32.mrb[0].mxu0
        %v817 = vadd.f32 %v698, %v816
        %v818 = vpop.f32.mrb[0].mxu0
        %819 = vmatprep.mubr.f32.mxu0 0.0
        %820 = vmatmul.mubr.f32.gmra.mrb[0].mxu0 %v720
        %v821 = vpop.f32.mrb[0].mxu0
        %v822 = vadd.f32 %v698, %v821
        %v823 = vpop.f32.mrb[0].mxu0
        %824 = vmatprep.mubr.f32.mxu0 0.0
        %825 = vmatmul.mubr.f32.gmra.mrb[0].mxu0 %v723
        %v826 = vpop.f32.mrb[0].mxu0
        %v827 = vadd.f32 %v698, %v826
        %v828 = vpop.f32.mrb[0].mxu0
        %829 = vdwg.mxu0
        %v830 = vmax.f32 %v792, 0.0
        %v831 = vmax.f32 %v797, 0.0
        %v832 = vmax.f32 %v802, 0.0
        %v833 = vmax.f32 %v807, 0.0
        %v834 = vmax.f32 %v812, 0.0
        %v835 = vmax.f32 %v817, 0.0
        %v836 = vmax.f32 %v822, 0.0
        %v837 = vmax.f32 %v827, 0.0
        %v838 = vld [vmem:[%s8] sm:$0xff]
        %v839 = vld [vmem:[%s8 + $0x8] sm:$0xff]
        %v840 = vld [vmem:[%s8 + $0x10] sm:$0xff]
        %v841 = vld [vmem:[%s8 + $0x18] sm:$0xff]
        %v842 = vld [vmem:[%s9] sm:$0x1]
        %v844 = vlaneseq
        %v845 = vshrl.u32 %v844, 7
        %v846 = vsub.s32 0, %v845
        %v847 = vrot.slane %v842, %v846
        %v850 = vsel %vm700, %v830, 0
        %v853 = vsel %vm700, %v831, 0
        %v856 = vsel %vm700, %v832, 0
        %v859 = vsel %vm700, %v833, 0
        %v862 = vsel %vm700, %v834, 0
        %v865 = vsel %vm700, %v835, 0
        %v868 = vsel %vm700, %v836, 0
        %v871 = vsel %vm700, %v837, 0
        %873 = vmatprep.subr.mxu0 0.0
        %874 = vmatpush1.msra.mxu0 %v838
        %875 = vmatprep.subr.mxu0 0.0
        %876 = vmatpush1.msra.mxu0 %v839
        %877 = vmatprep.subr.mxu0 0.0
        %878 = vmatpush1.msra.mxu0 %v840
        %879 = vmatprep.subr.mxu0 0.0
        %880 = vmatpush1.msra.mxu0 %v841
        %881 = vmatprep.subr.mxu0 0.0
        %882 = vmatpush1.msra.mxu0 0.0
        %883 = vmatprep.subr.mxu0 0.0
        %884 = vmatpush1.msra.mxu0 0.0
        %885 = vmatprep.subr.mxu0 0.0
        %886 = vmatpush1.msra.mxu0 0.0
        %887 = vmatprep.subr.mxu0 0.0
        %888 = vmatpush1.msra.mxu0 0.0
        %889 = vmatprep.subr.mxu0 0.0
        %890 = vmatpush1.msra.mxu0 0.0
        %891 = vmatprep.subr.mxu0 0.0
        %892 = vmatpush1.msra.mxu0 0.0
        %893 = vmatprep.subr.mxu0 0.0
        %894 = vmatpush1.msra.mxu0 0.0
        %895 = vmatprep.subr.mxu0 0.0
        %896 = vmatpush1.msra.mxu0 0.0
        %897 = vmatprep.subr.mxu0 0.0
        %898 = vmatpush1.msra.mxu0 0.0
        %899 = vmatprep.subr.mxu0 0.0
        %900 = vmatpush1.msra.mxu0 0.0
        %901 = vmatprep.subr.mxu0 0.0
        %902 = vmatpush1.msra.mxu0 0.0
        %903 = vmatprep.subr.mxu0 0.0
        %904 = vmatpush1.msra.mxu0 0.0
        %905 = vmatprep.subr.mxu0 0.0
        %906 = vmatpush1.msra.mxu0 0.0
        %907 = vmatprep.subr.mxu0 0.0
        %908 = vmatpush1.msra.mxu0 0.0
        %909 = vmatprep.subr.mxu0 0.0
        %910 = vmatpush1.msra.mxu0 0.0
        %911 = vmatprep.subr.mxu0 0.0
        %912 = vmatpush1.msra.mxu0 0.0
        %913 = vmatprep.subr.mxu0 0.0
        %914 = vmatpush1.msra.mxu0 0.0
        %915 = vmatprep.subr.mxu0 0.0
        %916 = vmatpush1.msra.mxu0 0.0
        %917 = vmatprep.subr.mxu0 0.0
        %918 = vmatpush1.msra.mxu0 0.0
        %919 = vmatprep.subr.mxu0 0.0
        %920 = vmatpush1.msra.mxu0 0.0
        %921 = vmatprep.subr.mxu0 0.0
        %922 = vmatpush1.msra.mxu0 0.0
        %923 = vmatprep.subr.mxu0 0.0
        %924 = vmatpush1.msra.mxu0 0.0
        %925 = vmatprep.subr.mxu0 0.0
        %926 = vmatpush1.msra.mxu0 0.0
        %927 = vmatprep.subr.mxu0 0.0
        %928 = vmatpush1.msra.mxu0 0.0
        %929 = vmatprep.subr.mxu0 0.0
        %930 = vmatpush1.msra.mxu0 0.0
        %931 = vmatprep.subr.mxu0 0.0
        %932 = vmatpush1.msra.mxu0 0.0
        %933 = vmatprep.subr.mxu0 0.0
        %934 = vmatpush1.msra.mxu0 0.0
        %935 = vmatprep.subr.mxu0 0.0
        %936 = vmatpush1.msra.mxu0 0.0
        %937 = vmatprep.mubr.f32.mxu0 0.0
        %938 = vmatmul.mubr.f32.gmra.mrb[0].mxu0 %v850
        %v939 = vpop.f32.mrb[0].mxu0
        %v940 = vadd.f32 %v847, %v939
        %v941 = vpop.f32.mrb[0].mxu0
        %942 = vmatprep.mubr.f32.mxu0 0.0
        %943 = vmatmul.mubr.f32.gmra.mrb[0].mxu0 %v853
        %v944 = vpop.f32.mrb[0].mxu0
        %v945 = vadd.f32 %v847, %v944
        %v946 = vpop.f32.mrb[0].mxu0
        %947 = vmatprep.mubr.f32.mxu0 0.0
        %948 = vmatmul.mubr.f32.gmra.mrb[0].mxu0 %v856
        %v949 = vpop.f32.mrb[0].mxu0
        %v950 = vadd.f32 %v847, %v949
        %v951 = vpop.f32.mrb[0].mxu0
        %952 = vmatprep.mubr.f32.mxu0 0.0
        %953 = vmatmul.mubr.f32.gmra.mrb[0].mxu0 %v859
        %v954 = vpop.f32.mrb[0].mxu0
        %v955 = vadd.f32 %v847, %v954
        %v956 = vpop.f32.mrb[0].mxu0
        %957 = vmatprep.mubr.f32.mxu0 0.0
        %958 = vmatmul.mubr.f32.gmra.mrb[0].mxu0 %v862
        %v959 = vpop.f32.mrb[0].mxu0
        %v960 = vadd.f32 %v847, %v959
        %v961 = vpop.f32.mrb[0].mxu0
        %962 = vmatprep.mubr.f32.mxu0 0.0
        %963 = vmatmul.mubr.f32.gmra.mrb[0].mxu0 %v865
        %v964 = vpop.f32.mrb[0].mxu0
        %v965 = vadd.f32 %v847, %v964
        %v966 = vpop.f32.mrb[0].mxu0
        %967 = vmatprep.mubr.f32.mxu0 0.0
        %968 = vmatmul.mubr.f32.gmra.mrb[0].mxu0 %v868
        %v969 = vpop.f32.mrb[0].mxu0
        %v970 = vadd.f32 %v847, %v969
        %v971 = vpop.f32.mrb[0].mxu0
        %972 = vmatprep.mubr.f32.mxu0 0.0
        %973 = vmatmul.mubr.f32.gmra.mrb[0].mxu0 %v871
        %v974 = vpop.f32.mrb[0].mxu0
        %v975 = vadd.f32 %v847, %v974
        %v976 = vpop.f32.mrb[0].mxu0
        %977 = vdwg.mxu0
        %v978 = vmax.f32 %v940, 0.0
        %v979 = vmax.f32 %v945, 0.0
        %v980 = vmax.f32 %v950, 0.0
        %v981 = vmax.f32 %v955, 0.0
        %v982 = vmax.f32 %v960, 0.0
        %v983 = vmax.f32 %v965, 0.0
        %v984 = vmax.f32 %v970, 0.0
        %v985 = vmax.f32 %v975, 0.0
        %v986 = vld [vmem:[%s2] sm:$0xff]
        %vm987 = vcmask 523264
        %v989 = vsel %vm987, %v986, 0
        %991 = vmatprep.subr.mxu0 0.0
        %992 = vmatpush1.msra.mxu0 %v978
        %993 = vmatprep.subr.mxu0 0.0
        %994 = vmatpush1.msra.mxu0 %v979
        %995 = vmatprep.subr.mxu0 0.0
        %996 = vmatpush1.msra.mxu0 %v980
        %997 = vmatprep.subr.mxu0 0.0
        %998 = vmatpush1.msra.mxu0 %v981
        %999 = vmatprep.subr.mxu0 0.0
        %1000 = vmatpush1.msra.mxu0 %v982
        %1001 = vmatprep.subr.mxu0 0.0
        %1002 = vmatpush1.msra.mxu0 %v983
        %1003 = vmatprep.subr.mxu0 0.0
        %1004 = vmatpush1.msra.mxu0 %v984
        %1005 = vmatprep.subr.mxu0 0.0
        %1006 = vmatpush1.msra.mxu0 %v985
        %1007 = vmatprep.subr.mxu0 0.0
        %1008 = vmatpush1.msra.mxu0 0.0
        %1009 = vmatprep.subr.mxu0 0.0
        %1010 = vmatpush1.msra.mxu0 0.0
        %1011 = vmatprep.subr.mxu0 0.0
        %1012 = vmatpush1.msra.mxu0 0.0
        %1013 = vmatprep.subr.mxu0 0.0
        %1014 = vmatpush1.msra.mxu0 0.0
        %1015 = vmatprep.subr.mxu0 0.0
        %1016 = vmatpush1.msra.mxu0 0.0
        %1017 = vmatprep.subr.mxu0 0.0
        %1018 = vmatpush1.msra.mxu0 0.0
        %1019 = vmatprep.subr.mxu0 0.0
        %1020 = vmatpush1.msra.mxu0 0.0
        %1021 = vmatprep.subr.mxu0 0.0
        %1022 = vmatpush1.msra.mxu0 0.0
        %1023 = vmatprep.subr.mxu0 0.0
        %1024 = vmatpush1.msra.mxu0 0.0
        %1025 = vmatprep.subr.mxu0 0.0
        %1026 = vmatpush1.msra.mxu0 0.0
        %1027 = vmatprep.subr.mxu0 0.0
        %1028 = vmatpush1.msra.mxu0 0.0
        %1029 = vmatprep.subr.mxu0 0.0
        %1030 = vmatpush1.msra.mxu0 0.0
        %1031 = vmatprep.subr.mxu0 0.0
        %1032 = vmatpush1.msra.mxu0 0.0
        %1033 = vmatprep.subr.mxu0 0.0
        %1034 = vmatpush1.msra.mxu0 0.0
        %1035 = vmatprep.subr.mxu0 0.0
        %1036 = vmatpush1.msra.mxu0 0.0
        %1037 = vmatprep.subr.mxu0 0.0
        %1038 = vmatpush1.msra.mxu0 0.0
        %1039 = vmatprep.subr.mxu0 0.0
        %1040 = vmatpush1.msra.mxu0 0.0
        %1041 = vmatprep.subr.mxu0 0.0
        %1042 = vmatpush1.msra.mxu0 0.0
        %1043 = vmatprep.subr.mxu0 0.0
        %1044 = vmatpush1.msra.mxu0 0.0
        %1045 = vmatprep.subr.mxu0 0.0
        %1046 = vmatpush1.msra.mxu0 0.0
        %1047 = vmatprep.subr.mxu0 0.0
        %1048 = vmatpush1.msra.mxu0 0.0
        %1049 = vmatprep.subr.mxu0 0.0
        %1050 = vmatpush1.msra.mxu0 0.0
        %1051 = vmatprep.subr.mxu0 0.0
        %1052 = vmatpush1.msra.mxu0 0.0
        %1053 = vmatprep.subr.mxu0 0.0
        %1054 = vmatpush1.msra.mxu0 0.0
        %1055 = vmatprep.mubr.f32.mxu0 0.0
        %1056 = vmatmul.mubr.f32.gmra.mrb[0].mxu0 %v989
        %v1057 = vpop.f32.mrb[0].mxu0
        %v1058 = vadd.f32 0.0, %v1057
        %v1059 = vpop.f32.mrb[0].mxu0
        %1060 = vdwg.mxu0
        %vm1061 = vcmask 130048
        %1062 = vst.msk [vmem:[%s369] sm:$0xff] %vm1061, %v1058
        %s1063 = sand.u32 %s252, 1
        %s1064 = scalar_lea.sflag [#allocation3], %s1063
        %s1065 = sand.u32 %s252, 1
        %s1066 = smul.addr %s1065, 8
        %s1067 = scalar_lea.vmem [#allocation2], %s1066
        // Predicated region
        $region61: #{tpu_custom_call.1} parent=59 // pred_check
          %p1068 = pneg %p262
        $region62: #{tpu_custom_call.1} parent=59 // pred_check_branch
          %1070 = sbr.rel (%p1068) target = $region64
        $region63: #{tpu_custom_call.1} parent=59 // pred_region
          %s1072 = ssub.s32 128, 128
          %1073 = vsyncadd %s1064, %s1072
          %s1074 = smul.addr %s24, 128
          %s1075 = scalar_lea.hbm %s10, %s1074
          %s1077 = sshll.u32 %s1067, 4
          %s1078 = int_to_ptr.vmem [resolvable:$true] %s1077
          %1080 = dma.vmem_to_hbm [thread:$0]  %s1078, 128, %s1075, %s1064
        $region64: #{tpu_custom_call.1} parent=59 // pred_fallthru
          _
      $region60: #{tpu_custom_call.1} parent=5 // pred_fallthru
        _
      %p1081 = scmp.le.s32.totalorder 2, %s19
      // Predicated region
      $region65: #{tpu_custom_call.1} parent=5 // pred_check
        %p1082 = pneg %p1081
      $region66: #{tpu_custom_call.1} parent=5 // pred_check_branch
        %1084 = sbr.rel (%p1082) target = $region68
      $region67: #{tpu_custom_call.1} parent=5 // pred_region
        %s1085 = ssub.s32 %s19, 2
        // Predicated region
        $region69: #{tpu_custom_call.1} parent=67 // pred_check
          %p1086 = pneg %p268
        $region70: #{tpu_custom_call.1} parent=67 // pred_check_branch
          %1088 = sbr.rel (%p1086) target = $region72
        $region71: #{tpu_custom_call.1} parent=67 // pred_region
          %s1089 = sand.u32 %s253, 1
          %s1090 = scalar_lea.sflag [#allocation3], %s1089
          %s1091 = sand.u32 %s253, 1
          %s1092 = smul.addr %s1091, 8
          %s1093 = scalar_lea.vmem [#allocation2], %s1092
          %1094 = dma.done %s1090, 128
        $region72: #{tpu_custom_call.1} parent=67 // pred_fallthru
          _
      $region68: #{tpu_custom_call.1} parent=5 // pred_fallthru
        _
    $region6: #{tpu_custom_call.1} parent=1 // loop_footer
      %s23 = sadd.s32 1, %s19
    $region7: #{tpu_custom_call.1} parent=1 // loop_footer_branch
      %18 = sbr.rel target = $region3
    $region8: #{tpu_custom_call.1} parent=1 // loop_exit
      _
    %1095 = vsyncpa [#allocation3], 1
    %s1096 = scalar_lea.sflag [#allocation3], 1
    %1097 = vsyncpa %s1096, 1

</llo_original>
